<compile_context>
chip_gen: v5e
topology: v5e:2x2
jax: 0.10.0
libtpu: 0.0.40
codegen_flags: <defaults>
</compile_context>

<pallas_src>
import math
import functools

import jax
import jax.numpy as jnp
from jax import lax
from jax.experimental import pallas as pl
from jax.experimental.pallas import tpu as pltpu


# ---------------------------------------------------------------------------
# helpers
# ---------------------------------------------------------------------------
def _pick_tile(dim, pref):
    """Preferred tile if it divides `dim`, else the full extent (toy shapes)."""
    # TODO(synk): for large dims not divisible by `pref`, pad or pick a divisor.
    if dim <= pref or dim % pref != 0:
        return dim
    return pref


# 32 MiB: raises the 16 MiB scoped default on v5e, matches the v6e/v7x default,
# and stays within v7x's 64 MiB physical VMEM.
_VMEM_LIMIT = 32 * 1024 * 1024


# ---------------------------------------------------------------------------
# Tiled, pipelined bias-free linear:  y = x @ W.T   (W is (Dout, Din))
# ---------------------------------------------------------------------------
def _linear_kernel(x_ref, w_ref, o_ref, acc_ref):
    @pl.when(pl.program_id(2) == 0)
    def _init():
        acc_ref[...] = jnp.zeros_like(acc_ref)

    # Contract the last dim of both operands -> x @ W.T with no transpose.
    acc_ref[...] += lax.dot_general(
        x_ref[...], w_ref[...],
        dimension_numbers=(((1,), (1,)), ((), ())),
        preferred_element_type=jnp.float32)

    @pl.when(pl.program_id(2) == pl.num_programs(2) - 1)
    def _finalize():
        o_ref[...] = acc_ref[...].astype(o_ref.dtype)


def linear_nobias(x2d, w, *, tm_pref=256, tn_pref=256, tk_pref=512):
    """x2d: (M, Din) f32, w: (Dout, Din) f32 -> (M, Dout) f32."""
    M, Din = x2d.shape
    Dout, Din_w = w.shape
    assert Din == Din_w
    tm = _pick_tile(M, tm_pref)
    tn = _pick_tile(Dout, tn_pref)
    tk = _pick_tile(Din, tk_pref)
    grid = (M // tm, Dout // tn, Din // tk)

    cost = pl.CostEstimate(
        flops=2 * M * Dout * Din,
        transcendentals=0,
        bytes_accessed=4 * (M * Din + Dout * Din + M * Dout))

    # TODO(synk): optional bf16 MXU inputs with f32 accumulation (v6e/v7x) kept
    # off to preserve the module's f32 numerics exactly.
    return pl.pallas_call(
        _linear_kernel,
        out_shape=jax.ShapeDtypeStruct((M, Dout), jnp.float32),
        grid_spec=pltpu.PrefetchScalarGridSpec(
            num_scalar_prefetch=0,
            grid=grid,
            in_specs=[pl.BlockSpec((tm, tk), lambda i, j, kk: (i, kk)),
                      pl.BlockSpec((tn, tk), lambda i, j, kk: (j, kk))],
            out_specs=pl.BlockSpec((tm, tn), lambda i, j, kk: (i, j)),
            scratch_shapes=[pltpu.VMEM((tm, tn), jnp.float32)]),
        compiler_params=pltpu.CompilerParams(
            dimension_semantics=("parallel", "parallel", "arbitrary"),
            vmem_limit_bytes=_VMEM_LIMIT),
        cost_estimate=cost,
    )(x2d, w)


# ---------------------------------------------------------------------------
# Flash-style multi-head attention (heads live in the lane dimension)
# ---------------------------------------------------------------------------
def _flash_att_body(mask_ref, q_ref, k_ref, v_ref, o_ref, m_sc, l_sc, acc_sc,
                    *, inv_scale, num_heads, att_size):
    ki = pl.program_id(2)

    @pl.when(ki == 0)
    def _init():
        m_sc[...] = jnp.full_like(m_sc, -jnp.inf)
        l_sc[...] = jnp.zeros_like(l_sc)
        acc_sc[...] = jnp.zeros_like(acc_sc)

    q = q_ref[...]          # (tq, h*d) lane-dense load
    k = k_ref[...]          # (tk, h*d)
    v = v_ref[...]          # (tk, h*d)
    neg = None
    if mask_ref is not None:
        neg = mask_ref[...] == 0          # (tq, tk)

    d = att_size
    for hh in range(num_heads):           # static unroll over heads
        sl = slice(hh * d, (hh + 1) * d)
        qh, kh, vh = q[:, sl], k[:, sl], v[:, sl]

        # s = (qh @ kh.T) / sqrt(h) -- last-dim contraction, no transpose.
        s = lax.dot_general(
            qh, kh, dimension_numbers=(((1,), (1,)), ((), ())),
            preferred_element_type=jnp.float32) * inv_scale      # (tq, tk)
        if neg is not None:
            s = jnp.where(neg, jnp.float32(-1e9), s)             # masked_fill

        m_prev = m_sc[:, hh:hh + 1]                              # (tq, 1)
        m_new = jnp.maximum(m_prev, jnp.max(s, axis=-1, keepdims=True))
        alpha = jnp.exp(m_prev - m_new)
        p = jnp.exp(s - m_new)                                   # (tq, tk)

        l_sc[:, sl] = alpha * l_sc[:, sl] + jnp.sum(p, axis=-1, keepdims=True)
        acc_sc[:, sl] = alpha * acc_sc[:, sl] + jnp.dot(
            p, vh, preferred_element_type=jnp.float32)
        m_sc[:, hh:hh + 1] = m_new

    # TODO(synk): training-mode dropout on the attention probabilities is not
    # reproduced (eval-mode identity).

    @pl.when(ki == pl.num_programs(2) - 1)
    def _finalize():
        # Single lane-dense (tq, h*d) store; approx reciprocal goes to the EUP.
        o_ref[...] = (acc_sc[...] *
                      pl.reciprocal(l_sc[...], approx=True)).astype(o_ref.dtype)


def _flash_att_kernel(q_ref, k_ref, v_ref, o_ref, m_sc, l_sc, acc_sc, **kw):
    _flash_att_body(None, q_ref, k_ref, v_ref, o_ref, m_sc, l_sc, acc_sc, **kw)


def _flash_att_kernel_masked(mask_ref, q_ref, k_ref, v_ref, o_ref,
                             m_sc, l_sc, acc_sc, **kw):
    _flash_att_body(mask_ref, q_ref, k_ref, v_ref, o_ref, m_sc, l_sc, acc_sc, **kw)


def _multihead_attention(Qp, Kp, Vp, h, inv_scale, mask=None,
                         *, tq_pref=256, tk_pref=512):
    """Qp: (B, Sq, D), Kp/Vp: (B, Sk, D), mask: (B, Sq, Sk) or None -> (B, Sq, D)."""
    B, Sq, D = Qp.shape
    Sk = Kp.shape[1]
    d = D // h
    tq = _pick_tile(Sq, tq_pref)
    tk = _pick_tile(Sk, tk_pref)
    grid = (B, Sq // tq, Sk // tk)

    q_spec = pl.BlockSpec((None, tq, D), lambda b, qi, ki: (b, qi, 0))
    k_spec = pl.BlockSpec((None, tk, D), lambda b, qi, ki: (b, ki, 0))
    v_spec = pl.BlockSpec((None, tk, D), lambda b, qi, ki: (b, ki, 0))
    o_spec = pl.BlockSpec((None, tq, D), lambda b, qi, ki: (b, qi, 0))

    scratch = [pltpu.VMEM((tq, h), jnp.float32),   # running row-max per head
               pltpu.VMEM((tq, D), jnp.float32),   # running denom (lane-expanded)
               pltpu.VMEM((tq, D), jnp.float32)]   # running numerator

    flops = 4 * B * h * Sq * Sk * d
    transcendentals = B * h * Sq * Sk
    bytes_accessed = 4 * (2 * B * Sq * D + 2 * B * Sk * D)

    kw = dict(inv_scale=inv_scale, num_heads=h, att_size=d)
    if mask is None:
        kern = functools.partial(_flash_att_kernel, **kw)
        in_specs = [q_spec, k_spec, v_spec]
        operands = (Qp, Kp, Vp)
    else:
        m_spec = pl.BlockSpec((None, tq, tk), lambda b, qi, ki: (b, qi, ki))
        kern = functools.partial(_flash_att_kernel_masked, **kw)
        in_specs = [m_spec, q_spec, k_spec, v_spec]
        operands = (mask, Qp, Kp, Vp)
        bytes_accessed += 4 * B * Sq * Sk

    return pl.pallas_call(
        kern,
        out_shape=jax.ShapeDtypeStruct((B, Sq, D), jnp.float32),
        grid_spec=pltpu.PrefetchScalarGridSpec(
            num_scalar_prefetch=0,
            grid=grid,
            in_specs=in_specs,
            out_specs=o_spec,
            scratch_shapes=scratch),
        compiler_params=pltpu.CompilerParams(
            dimension_semantics=("parallel", "parallel", "arbitrary"),
            vmem_limit_bytes=_VMEM_LIMIT),
        cost_estimate=pl.CostEstimate(flops=flops,
                                      transcendentals=transcendentals,
                                      bytes_accessed=bytes_accessed),
    )(*operands)


# ---------------------------------------------------------------------------
# Module forward (glue in plain JAX, hot paths in Pallas)
# ---------------------------------------------------------------------------
def transformer_att_forward(params, q, k, v, h, mask=None):
    B, Sq, D = q.shape
    Sk = k.shape[1]
    assert D % h == 0
    inv_scale = 1.0 / math.sqrt(float(h))   # module uses scale = sqrt(h)

    if (q is k) and (k is v):
        # Self-attention: fuse the three projections -> one pass over x.
        w_qkv = jnp.concatenate([params["Q"], params["K"], params["V"]], axis=0)
        qkv = linear_nobias(q.reshape(B * Sq, D), w_qkv)         # (M, 3D)
        Qp = qkv[:, :D].reshape(B, Sq, D)
        Kp = qkv[:, D:2 * D].reshape(B, Sk, D)
        Vp = qkv[:, 2 * D:].reshape(B, Sk, D)
    else:
        Qp = linear_nobias(q.reshape(B * Sq, D), params["Q"]).reshape(B, Sq, D)
        Kp = linear_nobias(k.reshape(B * Sk, D), params["K"]).reshape(B, Sk, D)
        Vp = linear_nobias(v.reshape(B * Sk, D), params["V"]).reshape(B, Sk, D)

    # Attention output comes back directly in (B, Sq, h*att_size) layout; no
    # (0,2,1,3) transposes anywhere (heads = static lane slices in the kernel).
    att = _multihead_attention(Qp, Kp, Vp, h, inv_scale, mask=mask)

    out = linear_nobias(att.reshape(B * Sq, D), params["fc"])
    return out.reshape(B, Sq, D)


# ---------------------------------------------------------------------------
# Pure-JAX reference (numerical sanity check only)
# ---------------------------------------------------------------------------
def reference_forward(params, q, k, v, h, mask=None):
    B, Sq, D = q.shape
    Sk = k.shape[1]
    d = D // h
    scale = math.sqrt(float(h))
    Q = (q @ params["Q"].T).reshape(B, Sq, h, d).transpose(0, 2, 1, 3)
    K = (k @ params["K"].T).reshape(B, Sk, h, d).transpose(0, 2, 1, 3)
    V = (v @ params["V"].T).reshape(B, Sk, h, d).transpose(0, 2, 1, 3)
    alpha = jnp.einsum("bhqd,bhkd->bhqk", Q, K) / scale
    if mask is not None:
        alpha = jnp.where(mask[:, None, :, :] == 0, -1e9, alpha)
    alpha = jax.nn.softmax(alpha, axis=-1)
    att = jnp.einsum("bhqk,bhkd->bhqd", alpha, V)
    att = att.transpose(0, 2, 1, 3).reshape(B, Sq, D)
    return att @ params["fc"].T


def init_params(key, in_size):
    # PyTorch nn.Linear default init: U(-1/sqrt(fan_in), 1/sqrt(fan_in)).
    bound = 1.0 / math.sqrt(in_size)
    keys = jax.random.split(key, 4)
    names = ["Q", "K", "V", "fc"]
    return {n: jax.random.uniform(kk, (in_size, in_size), jnp.float32,
                                  minval=-bound, maxval=bound)
            for n, kk in zip(names, keys)}


if __name__ == "__main__":
    key = jax.random.PRNGKey(0)
    in_size, h = 32, 4
    batch, seq = 2, 8

    kp, kq, kk_, kv = jax.random.split(key, 4)
    params = init_params(kp, in_size)
    q = jax.random.normal(kq, (batch, seq, in_size), jnp.float32)
    k = jax.random.normal(kk_, (batch, seq, in_size), jnp.float32)
    v = jax.random.normal(kv, (batch, seq, in_size), jnp.float32)

    # 1) distinct q/k/v, no mask
    out = transformer_att_forward(params, q, k, v, h, mask=None)
    out = jax.block_until_ready(out)
    ref = reference_forward(params, q, k, v, h, mask=None)
    assert out.shape == (batch, seq, in_size)
    assert jnp.allclose(out, ref, rtol=5e-3, atol=5e-3), "mismatch (no mask)"

    # 2) self-attention (fused QKV path) with a causal mask (masked kernel path)
    causal = jnp.tril(jnp.ones((seq, seq), jnp.int32))
    mask = jnp.broadcast_to(causal[None], (batch, seq, seq))
    out_m = transformer_att_forward(params, q, q, q, h, mask=mask)
    out_m = jax.block_until_ready(out_m)
    ref_m = reference_forward(params, q, q, q, h, mask=mask)
    assert jnp.allclose(out_m, ref_m, rtol=5e-3, atol=5e-3), "mismatch (masked)"

    print("KERNEL_OK")
</pallas_src>

<mosaic_0001>
module attributes {stable_mosaic.version = 11 : i64} {
  func.func @_linear_kernel(%arg0: i32, %arg1: i32, %arg2: i32, %arg3: memref<16x32xf32, #tpu.memory_space<vmem>>, %arg4: memref<32x32xf32, #tpu.memory_space<vmem>>, %arg5: memref<16x32xf32, #tpu.memory_space<vmem>>, %arg6: memref<16x32xf32, #tpu.memory_space<vmem>>) attributes {dimension_semantics = [#tpu.dimension_semantics<parallel>, #tpu.dimension_semantics<parallel>, #tpu.dimension_semantics<arbitrary>], iteration_bounds = array<i64: 1, 1, 1>, scalar_prefetch = 0 : i64, scratch_operands = 1 : i64, tpu.core_type = #tpu.core_type<tc>, window_params = [{transform_indices = @transform_0, window_bounds = array<i64: 16, 32>}, {transform_indices = @transform_1, window_bounds = array<i64: 32, 32>}, {transform_indices = @transform_2, window_bounds = array<i64: 16, 32>}]} {
    %c0_i32 = arith.constant 0 : i32
    %0 = arith.cmpi eq, %arg2, %c0_i32 : i32
    %1 = arith.extui %0 : i1 to i32
    %c0_i32_0 = arith.constant 0 : i32
    %2 = arith.cmpi ne, %1, %c0_i32_0 : i32
    scf.if %2 {
      %cst_10 = arith.constant 0.000000e+00 : f32
      %12 = vector.broadcast %cst_10 : f32 to vector<16x32xf32>
      %c0_11 = arith.constant 0 : index
      %c0_12 = arith.constant 0 : index
      %13 = vector.load %arg6[%c0_11, %c0_12] : memref<16x32xf32, #tpu.memory_space<vmem>>, vector<16x32xf32>
      tpu.vector_store %arg6[%c0_11, %c0_12], %12 {strides = array<i32>} : memref<16x32xf32, #tpu.memory_space<vmem>>, vector<16x32xf32>,
    } else {
    }
    %c0 = arith.constant 0 : index
    %c0_1 = arith.constant 0 : index
    %3 = vector.load %arg6[%c0, %c0_1] : memref<16x32xf32, #tpu.memory_space<vmem>>, vector<16x32xf32>
    %c0_2 = arith.constant 0 : index
    %c0_3 = arith.constant 0 : index
    %4 = vector.load %arg3[%c0_2, %c0_3] : memref<16x32xf32, #tpu.memory_space<vmem>>, vector<16x32xf32>
    %c0_4 = arith.constant 0 : index
    %c0_5 = arith.constant 0 : index
    %5 = vector.load %arg4[%c0_4, %c0_5] : memref<32x32xf32, #tpu.memory_space<vmem>>, vector<32x32xf32>
    %cst = arith.constant dense<0.000000e+00> : vector<16x32xf32>
    %6 = tpu.matmul %4, %5, %cst {dimension_numbers = #tpu.dot_dimension_numbers<[1], [1], [0], [0], [0, 0, 1, 0], [], []>} : vector<16x32xf32>, vector<32x32xf32>, vector<16x32xf32> -> vector<16x32xf32>
    %7 = arith.addf %3, %6 : vector<16x32xf32>
    %c0_6 = arith.constant 0 : index
    %c0_7 = arith.constant 0 : index
    %8 = vector.load %arg6[%c0_6, %c0_7] : memref<16x32xf32, #tpu.memory_space<vmem>>, vector<16x32xf32>
    tpu.vector_store %arg6[%c0_6, %c0_7], %7 {strides = array<i32>} : memref<16x32xf32, #tpu.memory_space<vmem>>, vector<16x32xf32>,
    %c0_i32_8 = arith.constant 0 : i32
    %9 = arith.cmpi eq, %arg2, %c0_i32_8 : i32
    %10 = arith.extui %9 : i1 to i32
    %c0_i32_9 = arith.constant 0 : i32
    %11 = arith.cmpi ne, %10, %c0_i32_9 : i32
    scf.if %11 {
      %c0_10 = arith.constant 0 : index
      %c0_11 = arith.constant 0 : index
      %12 = vector.load %arg6[%c0_10, %c0_11] : memref<16x32xf32, #tpu.memory_space<vmem>>, vector<16x32xf32>
      %c0_12 = arith.constant 0 : index
      %c0_13 = arith.constant 0 : index
      %13 = vector.load %arg5[%c0_12, %c0_13] : memref<16x32xf32, #tpu.memory_space<vmem>>, vector<16x32xf32>
      tpu.vector_store %arg5[%c0_12, %c0_13], %12 {strides = array<i32>} : memref<16x32xf32, #tpu.memory_space<vmem>>, vector<16x32xf32>,
    } else {
    }
    return
  }
  func.func @transform_0(%arg0: i32, %arg1: i32, %arg2: i32) -> (i32, i32) {
    %c0_i32 = arith.constant 0 : i32
    return %arg0, %arg2 : i32, i32
  }
  func.func @transform_1(%arg0: i32, %arg1: i32, %arg2: i32) -> (i32, i32) {
    %c0_i32 = arith.constant 0 : i32
    return %arg1, %arg2 : i32, i32
  }
  func.func @transform_2(%arg0: i32, %arg1: i32, %arg2: i32) -> (i32, i32) {
    %c0_i32 = arith.constant 0 : i32
    return %arg0, %arg1 : i32, i32
  }
}

</mosaic_0001>

<llo_original>
// kernel: tpu_custom_call.1
$region0: #{tpu_custom_call.1}
  #allocation0 [shape = 'u32[]', space=smem, size = 0x4, offset = 0x4, fixed_abs, tag = 'smem constant byte address 0x4 - core index']
  #allocation1 [shape = 'u32[72,128]{1,0:T(1,128)}', space=vmem, size = 0x9000, scoped, tag = 'internal scratch']
  #allocation2 [shape = 'f32[16,32]{1,0:T(8,128)}', space=vmem, size = 0x2000, scoped, tag = 'scratch operand']
  %s0 = inlined_call_operand.hbm [shape: f32[16,32], index: 0, kind: input, shape index: {}]
  %s1 = inlined_call_operand.hbm [shape: f32[32,32], index: 1, kind: input, shape index: {}]
  %s2 = inlined_call_operand.hbm [shape: f32[16,32], index: 2, kind: output, shape index: {}]
  %s3 = sld [smem:[#allocation0]]
  $region34: #{tpu_custom_call.1} parent=0
    _
  %s5 = ssub.s32 1, %s3
  %s6 = scalar_select 0, %s5, %s3
  $region1: #{tpu_custom_call.1} parent=0
    #allocation3 [shape = 'u8[8192]{0}', space=vmem, size = 0x2000, scoped, tag = 'input window, operand 0, single buffered']
    #allocation4 [shape = 's32[1]{0}', space=sflag, size = 0x4, scoped, tag = 'scoped memory for tpu_custom_call.1']
    #allocation5 [shape = 's32[1]{0}', space=sflag, size = 0x4, scoped, tag = 'scoped memory for tpu_custom_call.1']
    #allocation6 [shape = 'u8[16384]{0}', space=vmem, size = 0x4000, scoped, tag = 'input window, operand 1, single buffered']
    #allocation7 [shape = 's32[1]{0}', space=sflag, size = 0x4, scoped, tag = 'scoped memory for tpu_custom_call.1']
    #allocation8 [shape = 'u8[8192]{0}', space=vmem, size = 0x2000, scoped, tag = 'output window, operand 0, single buffered']
    %7 = vsyncpa [#allocation4], 0
    %8 = vsyncpa [#allocation7], 0
    %9 = vsyncpa [#allocation5], 0
    // Predicated region
    $region2: #{tpu_custom_call.1} parent=1 // pred_check
      _
    $region3: #{tpu_custom_call.1} parent=1 // pred_check_branch
      %11 = sbr.rel (0) target = $region5
    $region4: #{tpu_custom_call.1} parent=1 // pred_region
      %13 = vsyncadd [#allocation4], 0
      %s14 = sshll.u32 %s0, 4
      %s15 = int_to_ptr.hbm [resolvable:$true] %s14
      %s16 = sshll.u32 [#allocation3], 4
      %s17 = int_to_ptr.vmem [resolvable:$true] %s16
      %22 = dma.hbm_to_vmem [thread:$0]  %s15, 256, %s17, [#allocation4], 128, 128, 8
    $region5: #{tpu_custom_call.1} parent=1 // pred_fallthru
      _
    // Predicated region
    $region6: #{tpu_custom_call.1} parent=1 // pred_check
      _
    $region7: #{tpu_custom_call.1} parent=1 // pred_check_branch
      %24 = sbr.rel (0) target = $region9
    $region8: #{tpu_custom_call.1} parent=1 // pred_region
      %26 = vsyncadd [#allocation7], 0
      %s27 = sshll.u32 %s1, 4
      %s28 = int_to_ptr.hbm [resolvable:$true] %s27
      %s29 = sshll.u32 [#allocation6], 4
      %s30 = int_to_ptr.vmem [resolvable:$true] %s29
      %35 = dma.hbm_to_vmem [thread:$0]  %s28, 512, %s30, [#allocation7], 128, 128, 8
    $region9: #{tpu_custom_call.1} parent=1 // pred_fallthru
      _
    // Predicated region
    $region10: #{tpu_custom_call.1} parent=1 // pred_check
      _
    $region11: #{tpu_custom_call.1} parent=1 // pred_check_branch
      %37 = sbr.rel (0) target = $region13
    $region12: #{tpu_custom_call.1} parent=1 // pred_region
      %39 = dma.done [#allocation4], 256
    $region13: #{tpu_custom_call.1} parent=1 // pred_fallthru
      _
    // Predicated region
    $region14: #{tpu_custom_call.1} parent=1 // pred_check
      _
    $region15: #{tpu_custom_call.1} parent=1 // pred_check_branch
      %41 = sbr.rel (0) target = $region17
    $region16: #{tpu_custom_call.1} parent=1 // pred_region
      %43 = dma.done [#allocation7], 512
    $region17: #{tpu_custom_call.1} parent=1 // pred_fallthru
      _
    %p44 = scmp.eq.s32.totalorder 0, 0
    // Predicated region
    $region18: #{tpu_custom_call.1} parent=1 // pred_check
      %p45 = pneg %p44
    $region19: #{tpu_custom_call.1} parent=1 // pred_check_branch
      %47 = sbr.rel (%p45) target = $region21
    $region20: #{tpu_custom_call.1} parent=1 // pred_region
      %vm48 = vcmask 261120
      %49 = vst.msk [vmem:[#allocation2] sm:$0xff] %vm48, 0.0
      %50 = vst.msk [vmem:[#allocation2 + $0x8] sm:$0xff] %vm48, 0.0
    $region21: #{tpu_custom_call.1} parent=1 // pred_fallthru
      _
    %v51 = vld [vmem:[#allocation2] sm:$0xff]
    %v52 = vld [vmem:[#allocation2 + $0x8] sm:$0xff]
    %v53 = vld [vmem:[#allocation3] sm:$0xff]
    %v54 = vld [vmem:[#allocation3 + $0x8] sm:$0xff]
    %v55 = vld [vmem:[#allocation6] sm:$0xff]
    %v56 = vld [vmem:[#allocation6 + $0x8] sm:$0xff]
    %v57 = vld [vmem:[#allocation6 + $0x10] sm:$0xff]
    %v58 = vld [vmem:[#allocation6 + $0x18] sm:$0xff]
    %vm59 = vcmask 261120
    %v61 = vsel %vm59, %v53, 0
    %v64 = vsel %vm59, %v54, 0
    %v67 = vsel %vm59, %v55, 0
    %v70 = vsel %vm59, %v56, 0
    %v73 = vsel %vm59, %v57, 0
    %v76 = vsel %vm59, %v58, 0
    %78 = vmatpush.xpose.msra.mxu0 0.0
    %79 = vmatpush.xpose.msra.mxu0 0.0
    %80 = vmatpush.xpose.msra.mxu0 0.0
    %81 = vmatpush.xpose.msra.mxu0 0.0
    %82 = vmatpush.xpose.msra.mxu0 0.0
    %83 = vmatpush.xpose.msra.mxu0 0.0
    %84 = vmatpush.xpose.msra.mxu0 0.0
    %85 = vmatpush.xpose.msra.mxu0 0.0
    %86 = vmatpush.xpose.msra.mxu0 0.0
    %87 = vmatpush.xpose.msra.mxu0 0.0
    %88 = vmatpush.xpose.msra.mxu0 0.0
    %89 = vmatpush.xpose.msra.mxu0 0.0
    %90 = vmatpush.xpose.msra.mxu0 %v76
    %91 = vmatpush.xpose.msra.mxu0 %v73
    %92 = vmatpush.xpose.msra.mxu0 %v70
    %93 = vmatpush.xpose.msra.mxu0 %v67
    %94 = vmatmul.f32.gmra.mxu0 %v61
    %v95 = vpop.f32.mrf.mxu0
    %v96 = vadd.f32 0.0, %v95
    %97 = vmatmul.f32.gmra.mxu0 %v64
    %v98 = vpop.f32.mrf.mxu0
    %v99 = vadd.f32 0.0, %v98
    %100 = vdwg.mxu0
    %v101 = vadd.f32 %v51, %v96
    %v102 = vadd.f32 %v52, %v99
    %103 = vst.msk [vmem:[#allocation2] sm:$0xff] %vm59, %v101
    %104 = vst.msk [vmem:[#allocation2 + $0x8] sm:$0xff] %vm59, %v102
    // Predicated region
    $region22: #{tpu_custom_call.1} parent=1 // pred_check
      %p105 = pneg %p44
    $region23: #{tpu_custom_call.1} parent=1 // pred_check_branch
      %107 = sbr.rel (%p105) target = $region25
    $region24: #{tpu_custom_call.1} parent=1 // pred_region
      %v108 = vld [vmem:[#allocation2] sm:$0xff]
      %v109 = vld [vmem:[#allocation2 + $0x8] sm:$0xff]
      %110 = vst.msk [vmem:[#allocation8] sm:$0xff] %vm59, %v108
      %111 = vst.msk [vmem:[#allocation8 + $0x8] sm:$0xff] %vm59, %v109
    $region25: #{tpu_custom_call.1} parent=1 // pred_fallthru
      _
    // Predicated region
    $region26: #{tpu_custom_call.1} parent=1 // pred_check
      _
    $region27: #{tpu_custom_call.1} parent=1 // pred_check_branch
      %113 = sbr.rel (0) target = $region29
    $region28: #{tpu_custom_call.1} parent=1 // pred_region
      %115 = vsyncadd [#allocation5], 0
      %s116 = sshll.u32 [#allocation8], 4
      %s117 = int_to_ptr.vmem [resolvable:$true] %s116
      %s118 = sshll.u32 %s2, 4
      %s119 = int_to_ptr.hbm [resolvable:$true] %s118
      %124 = dma.vmem_to_hbm [thread:$0]  %s117, 256, %s119, [#allocation5], 128, 128, 8
    $region29: #{tpu_custom_call.1} parent=1 // pred_fallthru
      _
    // Predicated region
    $region30: #{tpu_custom_call.1} parent=1 // pred_check
      _
    $region31: #{tpu_custom_call.1} parent=1 // pred_check_branch
      %126 = sbr.rel (0) target = $region33
    $region32: #{tpu_custom_call.1} parent=1 // pred_region
      %128 = dma.done [#allocation5], 256
    $region33: #{tpu_custom_call.1} parent=1 // pred_fallthru
      _
    %129 = vsyncpa [#allocation4], 1
    %130 = vsyncpa [#allocation7], 1
    %131 = vsyncpa [#allocation5], 1

</llo_original>
